<compile_context>
chip_gen: v7x
topology: tpu7x:2x2x1
jax: 0.10.0
libtpu: 0.0.40
codegen_flags: <defaults>
</compile_context>

<pallas_src>
import math
import jax
import jax.numpy as jnp
from jax.experimental import pallas as pl
from jax.experimental.pallas import tpu as pltpu


def _erf(x):
    # Abramowitz & Stegun 7.1.26 polynomial erf (|err| < 1.5e-7), built only from
    # ops guaranteed to lower in Mosaic (exp / mul / add / where).
    a1, a2, a3, a4, a5 = (0.254829592, -0.284496736, 1.421413741,
                          -1.453152027, 1.061405429)
    p = 0.3275911
    s = jnp.where(x < 0.0, -1.0, 1.0)
    z = jnp.abs(x)
    t = 1.0 / (1.0 + p * z)
    poly = t * (a1 + t * (a2 + t * (a3 + t * (a4 + t * a5))))
    return s * (1.0 - poly * jnp.exp(-z * z))


def _gelu_exact(x):
    # Matches PyTorch F.gelu default (exact, erf-based), computed in f32.
    return 0.5 * x * (1.0 + _erf(x * (1.0 / math.sqrt(2.0))))


def _ffn_kernel(x_ref, w1_ref, b1_ref, w2_ref, b2_ref, o_ref):
    # x_ref: (tm, dim)   w1_ref: (dim, hidden)   b1_ref: (1, hidden)
    # w2_ref: (hidden, dim)   b2_ref: (1, dim)   o_ref: (tm, dim)
    x = x_ref[...]                                   # native dtype -> MXU
    h = jnp.dot(x, w1_ref[...], preferred_element_type=jnp.float32)
    h = h + b1_ref[...].astype(jnp.float32)
    h = _gelu_exact(h)                               # f32 elementwise epilogue
    # TODO(synk): training-mode dropout (dp_rate > 0) not implemented; identity here.
    h = h.astype(w2_ref.dtype)                       # keep second MXU operand narrow
    y = jnp.dot(h, w2_ref[...], preferred_element_type=jnp.float32)
    y = y + b2_ref[...].astype(jnp.float32)
    o_ref[...] = y.astype(o_ref.dtype)


def position_wise_feed_forward(x, w1, b1, w2, b2, *, block_m=256):
    """x: (..., dim); w1: (dim, hidden); b1: (hidden,); w2: (hidden, dim); b2: (dim,).

    Weights are in (in_features, out_features) layout, i.e. the transpose of
    PyTorch nn.Linear's stored (out, in) weight.
    """
    *lead, dim = x.shape
    hidden = w1.shape[1]
    assert w1.shape == (dim, hidden) and w2.shape == (hidden, dim)

    M = math.prod(lead) if lead else 1
    x2 = x.reshape(M, dim)

    # Row-tile: multiple of 8 (sublane), and keep >= 2 grid steps when possible so the
    # parallel axis can be sharded across v7x's two TensorCores.
    m8 = ((M + 7) // 8) * 8
    tm = min(block_m, m8)
    tm = ((tm + 7) // 8) * 8
    if pl.cdiv(m8, tm) <= 1 and tm % 16 == 0:
        tm //= 2
    m_pad = pl.cdiv(M, tm) * tm
    if m_pad != M:
        x2 = jnp.pad(x2, ((0, m_pad - M), (0, 0)))

    b1r = b1.reshape(1, hidden)
    b2r = b2.reshape(1, dim)

    out = pl.pallas_call(
        _ffn_kernel,
        out_shape=jax.ShapeDtypeStruct((m_pad, dim), x.dtype),
        grid_spec=pltpu.PrefetchScalarGridSpec(
            num_scalar_prefetch=0,
            grid=(m_pad // tm,),
            in_specs=[
                pl.BlockSpec((tm, dim), lambda i: (i, 0)),        # x rows
                pl.BlockSpec((dim, hidden), lambda i: (0, 0)),    # W1 (resident)
                pl.BlockSpec((1, hidden), lambda i: (0, 0)),      # b1 (resident)
                pl.BlockSpec((hidden, dim), lambda i: (0, 0)),    # W2 (resident)
                pl.BlockSpec((1, dim), lambda i: (0, 0)),         # b2 (resident)
            ],
            out_specs=pl.BlockSpec((tm, dim), lambda i: (i, 0)),
        ),
        compiler_params=pltpu.CompilerParams(
            dimension_semantics=("parallel",),
        ),
    )(x2, w1, b1r, w2, b2r)

    if m_pad != M:
        out = out[:M]
    return out.reshape(*lead, dim)


def _reference(x, w1, b1, w2, b2):
    h = jnp.dot(x, w1) + b1
    h = jax.nn.gelu(h, approximate=False)   # exact GELU, like PyTorch F.gelu default
    return jnp.dot(h, w2) + b2


if __name__ == "__main__":
    # Small shapes consistent with the module: batch=2, seq=8, dim=128, hidden=256
    # (dim chosen lane-aligned so the output stores are unmasked / lane-dense).
    B, S, DIM, HIDDEN = 2, 8, 128, 256
    key = jax.random.PRNGKey(0)
    kx, kw1, kb1, kw2, kb2 = jax.random.split(key, 5)

    x = jax.random.normal(kx, (B, S, DIM), dtype=jnp.float32)
    bound1 = 1.0 / math.sqrt(DIM)
    bound2 = 1.0 / math.sqrt(HIDDEN)
    # (in, out) layout == transpose of PyTorch nn.Linear's stored weight.
    w1 = jax.random.uniform(kw1, (DIM, HIDDEN), jnp.float32, -bound1, bound1)
    b1 = jax.random.uniform(kb1, (HIDDEN,), jnp.float32, -bound1, bound1)
    w2 = jax.random.uniform(kw2, (HIDDEN, DIM), jnp.float32, -bound2, bound2)
    b2 = jax.random.uniform(kb2, (DIM,), jnp.float32, -bound2, bound2)

    out = jax.block_until_ready(position_wise_feed_forward(x, w1, b1, w2, b2))
    ref = _reference(x, w1, b1, w2, b2)
    assert out.shape == (B, S, DIM)
    max_err = jnp.max(jnp.abs(out - ref))
    assert jnp.allclose(out, ref, atol=1e-4, rtol=1e-4), f"max abs err {max_err}"

    # bf16 smoke run: MXU operands stay bf16, accumulation in f32.
    xb = x.astype(jnp.bfloat16)
    out_bf16 = jax.block_until_ready(
        position_wise_feed_forward(
            xb, w1.astype(jnp.bfloat16), b1.astype(jnp.bfloat16),
            w2.astype(jnp.bfloat16), b2.astype(jnp.bfloat16)))
    assert out_bf16.shape == (B, S, DIM)
    assert jnp.allclose(out_bf16.astype(jnp.float32), ref, atol=1e-1, rtol=1e-1)

    print("KERNEL_OK")
</pallas_src>

<mosaic_0001>
module attributes {stable_mosaic.version = 11 : i64} {
  func.func @_ffn_kernel(%arg0: i32, %arg1: memref<8x128xf32, #tpu.memory_space<vmem>>, %arg2: memref<128x256xf32, #tpu.memory_space<vmem>>, %arg3: memref<1x256xf32, #tpu.memory_space<vmem>>, %arg4: memref<256x128xf32, #tpu.memory_space<vmem>>, %arg5: memref<1x128xf32, #tpu.memory_space<vmem>>, %arg6: memref<8x128xf32, #tpu.memory_space<vmem>>) attributes {dimension_semantics = [#tpu.dimension_semantics<parallel>], iteration_bounds = array<i64: 2>, scalar_prefetch = 0 : i64, scratch_operands = 0 : i64, tpu.core_type = #tpu.core_type<tc>, window_params = [{transform_indices = @transform_0, window_bounds = array<i64: 8, 128>}, {pipeline_mode = #tpu.pipeline_mode<synchronous>, transform_indices = @transform_1, window_bounds = array<i64: 128, 256>}, {pipeline_mode = #tpu.pipeline_mode<synchronous>, transform_indices = @transform_2, window_bounds = array<i64: 1, 256>}, {pipeline_mode = #tpu.pipeline_mode<synchronous>, transform_indices = @transform_3, window_bounds = array<i64: 256, 128>}, {pipeline_mode = #tpu.pipeline_mode<synchronous>, transform_indices = @transform_4, window_bounds = array<i64: 1, 128>}, {transform_indices = @transform_5, window_bounds = array<i64: 8, 128>}]} {
    %c0 = arith.constant 0 : index
    %c0_0 = arith.constant 0 : index
    %0 = vector.load %arg1[%c0, %c0_0] : memref<8x128xf32, #tpu.memory_space<vmem>>, vector<8x128xf32>
    %c0_1 = arith.constant 0 : index
    %c0_2 = arith.constant 0 : index
    %1 = vector.load %arg2[%c0_1, %c0_2] : memref<128x256xf32, #tpu.memory_space<vmem>>, vector<128x256xf32>
    %cst = arith.constant dense<0.000000e+00> : vector<8x256xf32>
    %2 = tpu.matmul %0, %1, %cst {dimension_numbers = #tpu.dot_dimension_numbers<[1], [0], [0], [1], [0, 0, 1, 1], [], []>} : vector<8x128xf32>, vector<128x256xf32>, vector<8x256xf32> -> vector<8x256xf32>
    %c0_3 = arith.constant 0 : index
    %c0_4 = arith.constant 0 : index
    %3 = vector.load %arg3[%c0_3, %c0_4] : memref<1x256xf32, #tpu.memory_space<vmem>>, vector<1x256xf32>
    %4 = vector.broadcast %3 : vector<1x256xf32> to vector<8x256xf32>
    %5 = arith.addf %2, %4 : vector<8x256xf32>
    %cst_5 = arith.constant 5.000000e-01 : f32
    %6 = vector.broadcast %cst_5 : f32 to vector<8x256xf32>
    %7 = arith.mulf %6, %5 : vector<8x256xf32>
    %cst_6 = arith.constant 0.707106769 : f32
    %8 = vector.broadcast %cst_6 : f32 to vector<8x256xf32>
    %9 = arith.mulf %5, %8 : vector<8x256xf32>
    %cst_7 = arith.constant 0.000000e+00 : f32
    %10 = vector.broadcast %cst_7 : f32 to vector<8x256xf32>
    %11 = arith.cmpf olt, %9, %10 : vector<8x256xf32>
    %cst_8 = arith.constant -1.000000e+00 : f32
    %cst_9 = arith.constant 1.000000e+00 : f32
    %12 = vector.broadcast %cst_8 : f32 to vector<8x256xf32>
    %13 = vector.broadcast %cst_9 : f32 to vector<8x256xf32>
    %14 = arith.select %11, %12, %13 : vector<8x256xi1>, vector<8x256xf32>
    %15 = math.absf %9 : vector<8x256xf32>
    %cst_10 = arith.constant 0.327591091 : f32
    %16 = vector.broadcast %cst_10 : f32 to vector<8x256xf32>
    %17 = arith.mulf %16, %15 : vector<8x256xf32>
    %cst_11 = arith.constant 1.000000e+00 : f32
    %18 = vector.broadcast %cst_11 : f32 to vector<8x256xf32>
    %19 = arith.addf %18, %17 : vector<8x256xf32>
    %cst_12 = arith.constant 1.000000e+00 : f32
    %20 = vector.broadcast %cst_12 : f32 to vector<8x256xf32>
    %21 = arith.divf %20, %19 : vector<8x256xf32>
    %cst_13 = arith.constant 1.06140542 : f32
    %22 = vector.broadcast %cst_13 : f32 to vector<8x256xf32>
    %23 = arith.mulf %21, %22 : vector<8x256xf32>
    %cst_14 = arith.constant -1.45315206 : f32
    %24 = vector.broadcast %cst_14 : f32 to vector<8x256xf32>
    %25 = arith.addf %24, %23 : vector<8x256xf32>
    %26 = arith.mulf %21, %25 : vector<8x256xf32>
    %cst_15 = arith.constant 1.42141378 : f32
    %27 = vector.broadcast %cst_15 : f32 to vector<8x256xf32>
    %28 = arith.addf %27, %26 : vector<8x256xf32>
    %29 = arith.mulf %21, %28 : vector<8x256xf32>
    %cst_16 = arith.constant -0.284496725 : f32
    %30 = vector.broadcast %cst_16 : f32 to vector<8x256xf32>
    %31 = arith.addf %30, %29 : vector<8x256xf32>
    %32 = arith.mulf %21, %31 : vector<8x256xf32>
    %cst_17 = arith.constant 0.254829586 : f32
    %33 = vector.broadcast %cst_17 : f32 to vector<8x256xf32>
    %34 = arith.addf %33, %32 : vector<8x256xf32>
    %35 = arith.mulf %21, %34 : vector<8x256xf32>
    %cst_18 = arith.constant 0.000000e+00 : f32
    %36 = vector.broadcast %cst_18 : f32 to vector<8x256xf32>
    %37 = arith.subf %36, %15 : vector<8x256xf32>
    %38 = arith.mulf %37, %15 : vector<8x256xf32>
    %39 = math.exp %38 : vector<8x256xf32>
    %40 = arith.mulf %35, %39 : vector<8x256xf32>
    %cst_19 = arith.constant 1.000000e+00 : f32
    %41 = vector.broadcast %cst_19 : f32 to vector<8x256xf32>
    %42 = arith.subf %41, %40 : vector<8x256xf32>
    %43 = arith.mulf %14, %42 : vector<8x256xf32>
    %cst_20 = arith.constant 1.000000e+00 : f32
    %44 = vector.broadcast %cst_20 : f32 to vector<8x256xf32>
    %45 = arith.addf %44, %43 : vector<8x256xf32>
    %46 = arith.mulf %7, %45 : vector<8x256xf32>
    %c0_21 = arith.constant 0 : index
    %c0_22 = arith.constant 0 : index
    %47 = vector.load %arg4[%c0_21, %c0_22] : memref<256x128xf32, #tpu.memory_space<vmem>>, vector<256x128xf32>
    %cst_23 = arith.constant dense<0.000000e+00> : vector<8x128xf32>
    %48 = tpu.matmul %46, %47, %cst_23 {dimension_numbers = #tpu.dot_dimension_numbers<[1], [0], [0], [1], [0, 0, 1, 1], [], []>} : vector<8x256xf32>, vector<256x128xf32>, vector<8x128xf32> -> vector<8x128xf32>
    %c0_24 = arith.constant 0 : index
    %c0_25 = arith.constant 0 : index
    %49 = vector.load %arg5[%c0_24, %c0_25] : memref<1x128xf32, #tpu.memory_space<vmem>>, vector<1x128xf32>
    %50 = vector.broadcast %49 : vector<1x128xf32> to vector<8x128xf32>
    %51 = arith.addf %48, %50 : vector<8x128xf32>
    %c0_26 = arith.constant 0 : index
    %c0_27 = arith.constant 0 : index
    %52 = vector.load %arg6[%c0_26, %c0_27] : memref<8x128xf32, #tpu.memory_space<vmem>>, vector<8x128xf32>
    tpu.vector_store %arg6[%c0_26, %c0_27], %51 {strides = array<i32>} : memref<8x128xf32, #tpu.memory_space<vmem>>, vector<8x128xf32>,
    return
  }
  func.func @transform_0(%arg0: i32) -> (i32, i32) {
    %c0_i32 = arith.constant 0 : i32
    %c0_i32_0 = arith.constant 0 : i32
    return %arg0, %c0_i32 : i32, i32
  }
  func.func @transform_1(%arg0: i32) -> (i32, i32) {
    %c0_i32 = arith.constant 0 : i32
    %c0_i32_0 = arith.constant 0 : i32
    %c0_i32_1 = arith.constant 0 : i32
    return %c0_i32, %c0_i32_0 : i32, i32
  }
  func.func @transform_2(%arg0: i32) -> (i32, i32) {
    %c0_i32 = arith.constant 0 : i32
    %c0_i32_0 = arith.constant 0 : i32
    %c0_i32_1 = arith.constant 0 : i32
    return %c0_i32, %c0_i32_0 : i32, i32
  }
  func.func @transform_3(%arg0: i32) -> (i32, i32) {
    %c0_i32 = arith.constant 0 : i32
    %c0_i32_0 = arith.constant 0 : i32
    %c0_i32_1 = arith.constant 0 : i32
    return %c0_i32, %c0_i32_0 : i32, i32
  }
  func.func @transform_4(%arg0: i32) -> (i32, i32) {
    %c0_i32 = arith.constant 0 : i32
    %c0_i32_0 = arith.constant 0 : i32
    %c0_i32_1 = arith.constant 0 : i32
    return %c0_i32, %c0_i32_0 : i32, i32
  }
  func.func @transform_5(%arg0: i32) -> (i32, i32) {
    %c0_i32 = arith.constant 0 : i32
    %c0_i32_0 = arith.constant 0 : i32
    return %arg0, %c0_i32 : i32, i32
  }
}

</mosaic_0001>

<llo_original>
// kernel: tpu_custom_call.1
$region0: #{tpu_custom_call.1}
  #allocation0 [shape = 'u32[]', space=smem, size = 0x4, offset = 0x4, fixed_abs, tag = 'smem constant byte address 0x4 - core index']
  #allocation1 [shape = 'u32[144,128]{1,0:T(1,128)}', space=vmem, size = 0x12000, scoped, tag = 'internal scratch']
  %s0 = inlined_call_operand.hbm [shape: f32[16,128], index: 0, kind: input, shape index: {}]
  %s1 = inlined_call_operand.hbm [shape: f32[128,256], index: 1, kind: input, shape index: {}]
  %s2 = inlined_call_operand.vmem [shape: f32[1,256], index: 2, kind: input, shape index: {}]
  %s3 = inlined_call_operand.hbm [shape: f32[256,128], index: 3, kind: input, shape index: {}]
  %s4 = inlined_call_operand.vmem [shape: f32[1,128], index: 4, kind: input, shape index: {}]
  %s5 = inlined_call_operand.hbm [shape: f32[16,128], index: 5, kind: output, shape index: {}]
  %s6 = sld [smem:[#allocation0]]
  $region65: #{tpu_custom_call.1} parent=0
    _
  %s8 = ssub.s32 1, %s6
  %s9 = scalar_select 0, %s8, %s6
  $region1: #{tpu_custom_call.1} parent=0
    #allocation2 [shape = 'u8[8192]{0}', space=vmem, size = 0x2000, scoped, tag = 'input window, operand 0']
    #allocation3 [shape = 's32[2]{0}', space=sflag, size = 0x8, scoped, tag = 'scoped memory for tpu_custom_call.1']
    #allocation4 [shape = 's32[2]{0}', space=sflag, size = 0x8, scoped, tag = 'scoped memory for tpu_custom_call.1']
    #allocation5 [shape = 'u8[131072]{0}', space=vmem, size = 0x20000, scoped, tag = 'input window, operand 1, single buffered']
    #allocation6 [shape = 's32[1]{0}', space=sflag, size = 0x4, scoped, tag = 'scoped memory for tpu_custom_call.1']
    #allocation7 [shape = 'u8[131072]{0}', space=vmem, size = 0x20000, scoped, tag = 'input window, operand 3, single buffered']
    #allocation8 [shape = 'u8[8192]{0}', space=vmem, size = 0x2000, scoped, tag = 'output window, operand 0']
    %10 = vsyncpa [#allocation3], 0
    %s11 = scalar_lea.sflag [#allocation3], 1
    %12 = vsyncpa %s11, 0
    %13 = vsyncpa [#allocation6], 0
    %14 = vsyncpa [#allocation4], 0
    %s15 = scalar_lea.sflag [#allocation4], 1
    %16 = vsyncpa %s15, 0
    loop: start=0, step=1, limit=4
    $region2: #{tpu_custom_call.1} parent=1 // loop_pre_header
      _
    $region3: #{tpu_custom_call.1} parent=1 // loop_header
      %s18 = sphi 0, %s22
      %p19 = scmp.ge.s32.totalorder %s18, 4
      %s28 = sphi 0, %s30
      %s31 = sphi 0, %s28
      %s32 = sphi 0, %s31
      %s48 = sphi 0, %s32
      %s52 = sphi 0, %s52
      %s54 = sphi 0, %s52
      %s55 = sphi 0, %s54
      %s69 = sphi 0, %s55
      %s73 = sphi 0, %s73
      %s75 = sphi 0, %s73
      %s76 = sphi 0, %s75
      %s90 = sphi 0, %s76
      %s94 = sphi 0, %s94
      %s96 = sphi 0, %s94
      %s97 = sphi 0, %s96
      %s111 = sphi 0, %s97
      %s115 = sphi 0, %s115
      %s117 = sphi 0, %s115
      %s118 = sphi 0, %s117
      %s132 = sphi 0, %s118
      %s138 = sphi 0, %s140
      %s141 = sphi 0, %s138
      %s142 = sphi 0, %s141
      %s158 = sphi 0, %s142
    $region4: #{tpu_custom_call.1} parent=1 // loop_header_branch
      %21 = sbr.rel (%p19) target = $region8
    $region5: #{tpu_custom_call.1} parent=1 // loop_body
      %s23 = ssub.s32 %s18, 1
      %s24 = ssub.s32 %s18, 2
      %s25 = sadd.s32 %s18, 1
      %s26 = ssub.s32 %s18, %s25
      %p27 = scmp.eq.s32.totalorder %s26, 0
      %s29 = sadd.s32 %s28, 1
      %s30 = scalar_select %p27, %s28, %s29
      %p33 = pneg %p27
      %p34 = scmp.eq.s32.totalorder %s18, 1
      %p35 = por %p33, %p34
      %p36 = scmp.ne.s32.totalorder %s28, %s31
      %p37 = scmp.eq.s32.totalorder %s18, 0
      %p38 = por %p36, %p37
      %p39 = scmp.ne.s32.totalorder %s28, %s31
      %p40 = scmp.eq.s32.totalorder %s23, 1
      %p41 = por %p39, %p40
      %p42 = scmp.ne.s32.totalorder %s31, %s32
      %p43 = scmp.eq.s32.totalorder %s23, 0
      %p44 = por %p42, %p43
      %p45 = scmp.ne.s32.totalorder %s31, %s32
      %p46 = scmp.eq.s32.totalorder %s24, 1
      %p47 = por %p45, %p46
      %p49 = scmp.ne.s32.totalorder %s32, %s48
      %p50 = scmp.eq.s32.totalorder %s24, 0
      %p51 = por %p49, %p50
      %s53 = sadd.s32 %s52, 1
      %p56 = scmp.eq.s32.totalorder %s18, 1
      %p57 = scmp.ne.s32.totalorder %s52, %s54
      %p58 = scmp.eq.s32.totalorder %s18, 0
      %p59 = por %p57, %p58
      %p60 = scmp.ne.s32.totalorder %s52, %s54
      %p61 = scmp.eq.s32.totalorder %s23, 1
      %p62 = por %p60, %p61
      %p63 = scmp.ne.s32.totalorder %s54, %s55
      %p64 = scmp.eq.s32.totalorder %s23, 0
      %p65 = por %p63, %p64
      %p66 = scmp.ne.s32.totalorder %s54, %s55
      %p67 = scmp.eq.s32.totalorder %s24, 1
      %p68 = por %p66, %p67
      %p70 = scmp.ne.s32.totalorder %s55, %s69
      %p71 = scmp.eq.s32.totalorder %s24, 0
      %p72 = por %p70, %p71
      %s74 = sadd.s32 %s73, 1
      %p77 = scmp.eq.s32.totalorder %s18, 1
      %p78 = scmp.ne.s32.totalorder %s73, %s75
      %p79 = scmp.eq.s32.totalorder %s18, 0
      %p80 = por %p78, %p79
      %p81 = scmp.ne.s32.totalorder %s73, %s75
      %p82 = scmp.eq.s32.totalorder %s23, 1
      %p83 = por %p81, %p82
      %p84 = scmp.ne.s32.totalorder %s75, %s76
      %p85 = scmp.eq.s32.totalorder %s23, 0
      %p86 = por %p84, %p85
      %p87 = scmp.ne.s32.totalorder %s75, %s76
      %p88 = scmp.eq.s32.totalorder %s24, 1
      %p89 = por %p87, %p88
      %p91 = scmp.ne.s32.totalorder %s76, %s90
      %p92 = scmp.eq.s32.totalorder %s24, 0
      %p93 = por %p91, %p92
      %s95 = sadd.s32 %s94, 1
      %p98 = scmp.eq.s32.totalorder %s18, 1
      %p99 = scmp.ne.s32.totalorder %s94, %s96
      %p100 = scmp.eq.s32.totalorder %s18, 0
      %p101 = por %p99, %p100
      %p102 = scmp.ne.s32.totalorder %s94, %s96
      %p103 = scmp.eq.s32.totalorder %s23, 1
      %p104 = por %p102, %p103
      %p105 = scmp.ne.s32.totalorder %s96, %s97
      %p106 = scmp.eq.s32.totalorder %s23, 0
      %p107 = por %p105, %p106
      %p108 = scmp.ne.s32.totalorder %s96, %s97
      %p109 = scmp.eq.s32.totalorder %s24, 1
      %p110 = por %p108, %p109
      %p112 = scmp.ne.s32.totalorder %s97, %s111
      %p113 = scmp.eq.s32.totalorder %s24, 0
      %p114 = por %p112, %p113
      %s116 = sadd.s32 %s115, 1
      %p119 = scmp.eq.s32.totalorder %s18, 1
      %p120 = scmp.ne.s32.totalorder %s115, %s117
      %p121 = scmp.eq.s32.totalorder %s18, 0
      %p122 = por %p120, %p121
      %p123 = scmp.ne.s32.totalorder %s115, %s117
      %p124 = scmp.eq.s32.totalorder %s23, 1
      %p125 = por %p123, %p124
      %p126 = scmp.ne.s32.totalorder %s117, %s118
      %p127 = scmp.eq.s32.totalorder %s23, 0
      %p128 = por %p126, %p127
      %p129 = scmp.ne.s32.totalorder %s117, %s118
      %p130 = scmp.eq.s32.totalorder %s24, 1
      %p131 = por %p129, %p130
      %p133 = scmp.ne.s32.totalorder %s118, %s132
      %p134 = scmp.eq.s32.totalorder %s24, 0
      %p135 = por %p133, %p134
      %s136 = ssub.s32 %s18, %s25
      %p137 = scmp.eq.s32.totalorder %s136, 0
      %s139 = sadd.s32 %s138, 1
      %s140 = scalar_select %p137, %s138, %s139
      %p143 = pneg %p137
      %p144 = scmp.eq.s32.totalorder %s18, 1
      %p145 = por %p143, %p144
      %p146 = scmp.ne.s32.totalorder %s138, %s141
      %p147 = scmp.eq.s32.totalorder %s18, 0
      %p148 = por %p146, %p147
      %p149 = scmp.ne.s32.totalorder %s138, %s141
      %p150 = scmp.eq.s32.totalorder %s23, 1
      %p151 = por %p149, %p150
      %p152 = scmp.ne.s32.totalorder %s141, %s142
      %p153 = scmp.eq.s32.totalorder %s23, 0
      %p154 = por %p152, %p153
      %p155 = scmp.ne.s32.totalorder %s141, %s142
      %p156 = scmp.eq.s32.totalorder %s24, 1
      %p157 = por %p155, %p156
      %p159 = scmp.ne.s32.totalorder %s142, %s158
      %p160 = scmp.eq.s32.totalorder %s24, 0
      %p161 = por %p159, %p160
      %p162 = scmp.le.s32.totalorder 1, %s18
      %p163 = scmp.lt.s32.totalorder %s18, 3
      %p164 = pnand %p162, %p163
      %p165 = pneg %p164
      // Predicated region
      $region9: #{tpu_custom_call.1} parent=5 // pred_check
        _
      $region10: #{tpu_custom_call.1} parent=5 // pred_check_branch
        %167 = sbr.rel (%p164) target = $region12
      $region11: #{tpu_custom_call.1} parent=5 // pred_region
        %s168 = ssub.s32 %s18, 1
        // Predicated region
        $region13: #{tpu_custom_call.1} parent=11 // pred_check
          %p169 = pneg %p65
        $region14: #{tpu_custom_call.1} parent=11 // pred_check_branch
          %171 = sbr.rel (%p169) target = $region16
        $region15: #{tpu_custom_call.1} parent=11 // pred_region
          %s173 = ssub.s32 4096, 4096
          %174 = vsyncadd [#allocation6], %s173
          %s175 = sshll.u32 [#allocation5], 4
          %s176 = int_to_ptr.vmem [resolvable:$true] %s175
          %181 = dma.hbm_to_vmem [thread:$0]  %s1, 4096, %s176, [#allocation6], 256, 256, 16
        $region16: #{tpu_custom_call.1} parent=11 // pred_fallthru
          _
        // Predicated region
        $region17: #{tpu_custom_call.1} parent=11 // pred_check
          %p182 = pneg %p86
        $region18: #{tpu_custom_call.1} parent=11 // pred_check_branch
          %184 = sbr.rel (%p182) target = $region20
        $region19: #{tpu_custom_call.1} parent=11 // pred_region
          _
        $region20: #{tpu_custom_call.1} parent=11 // pred_fallthru
          _
        // Predicated region
        $region21: #{tpu_custom_call.1} parent=11 // pred_check
          %p185 = pneg %p107
        $region22: #{tpu_custom_call.1} parent=11 // pred_check_branch
          %187 = sbr.rel (%p185) target = $region24
        $region23: #{tpu_custom_call.1} parent=11 // pred_region
          %s189 = ssub.s32 4096, 4096
          %190 = vsyncadd [#allocation6], %s189
          %s191 = sshll.u32 [#allocation7], 4
          %s192 = int_to_ptr.vmem [resolvable:$true] %s191
          %197 = dma.hbm_to_vmem [thread:$0]  %s3, 4096, %s192, [#allocation6], 128, 128, 8
        $region24: #{tpu_custom_call.1} parent=11 // pred_fallthru
          _
        // Predicated region
        $region25: #{tpu_custom_call.1} parent=11 // pred_check
          %p198 = pneg %p128
        $region26: #{tpu_custom_call.1} parent=11 // pred_check_branch
          %200 = sbr.rel (%p198) target = $region28
        $region27: #{tpu_custom_call.1} parent=11 // pred_region
          _
        $region28: #{tpu_custom_call.1} parent=11 // pred_fallthru
          _
      $region12: #{tpu_custom_call.1} parent=5 // pred_fallthru
        _
      %p201 = scmp.lt.s32.totalorder %s18, 2
      // Predicated region
      $region29: #{tpu_custom_call.1} parent=5 // pred_check
        %p202 = pneg %p201
      $region30: #{tpu_custom_call.1} parent=5 // pred_check_branch
        %204 = sbr.rel (%p202) target = $region32
      $region31: #{tpu_custom_call.1} parent=5 // pred_region
        // Predicated region
        $region33: #{tpu_custom_call.1} parent=31 // pred_check
          %p205 = pneg %p38
        $region34: #{tpu_custom_call.1} parent=31 // pred_check_branch
          %207 = sbr.rel (%p205) target = $region36
        $region35: #{tpu_custom_call.1} parent=31 // pred_region
          %s208 = sand.u32 %s28, 1
          %s209 = scalar_lea.sflag [#allocation3], %s208
          %s210 = sand.u32 %s28, 1
          %s211 = smul.addr %s210, 8
          %s212 = scalar_lea.vmem [#allocation2], %s211
          %s214 = ssub.s32 128, 128
          %215 = vsyncadd %s209, %s214
          %s216 = smul.addr %s18, 128
          %s217 = scalar_lea.hbm %s0, %s216
          %s219 = sshll.u32 %s212, 4
          %s220 = int_to_ptr.vmem [resolvable:$true] %s219
          %222 = dma.hbm_to_vmem [thread:$0]  %s217, 128, %s220, %s209
        $region36: #{tpu_custom_call.1} parent=31 // pred_fallthru
          _
      $region32: #{tpu_custom_call.1} parent=5 // pred_fallthru
        _
      %p223 = scmp.le.s32.totalorder 1, %s18
      %p224 = scmp.lt.s32.totalorder %s18, 3
      %p225 = pnand %p223, %p224
      %p226 = pneg %p225
      // Predicated region
      $region37: #{tpu_custom_call.1} parent=5 // pred_check
        _
      $region38: #{tpu_custom_call.1} parent=5 // pred_check_branch
        %228 = sbr.rel (%p225) target = $region40
      $region39: #{tpu_custom_call.1} parent=5 // pred_region
        %s229 = ssub.s32 %s18, 1
        %s230 = sand.u32 %s31, 1
        %s231 = scalar_lea.sflag [#allocation3], %s230
        %s232 = sand.u32 %s31, 1
        %s233 = smul.addr %s232, 8
        %s234 = scalar_lea.vmem [#allocation2], %s233
        // Predicated region
        $region41: #{tpu_custom_call.1} parent=39 // pred_check
          %p235 = pneg %p44
        $region42: #{tpu_custom_call.1} parent=39 // pred_check_branch
          %237 = sbr.rel (%p235) target = $region44
        $region43: #{tpu_custom_call.1} parent=39 // pred_region
          %238 = dma.done %s231, 128
        $region44: #{tpu_custom_call.1} parent=39 // pred_fallthru
          _
        // Predicated region
        $region45: #{tpu_custom_call.1} parent=39 // pred_check
          %p239 = pneg %p65
        $region46: #{tpu_custom_call.1} parent=39 // pred_check_branch
          %241 = sbr.rel (%p239) target = $region48
        $region47: #{tpu_custom_call.1} parent=39 // pred_region
          %242 = dma.done [#allocation6], 4096
        $region48: #{tpu_custom_call.1} parent=39 // pred_fallthru
          _
        // Predicated region
        $region49: #{tpu_custom_call.1} parent=39 // pred_check
          %p243 = pneg %p107
        $region50: #{tpu_custom_call.1} parent=39 // pred_check_branch
          %245 = sbr.rel (%p243) target = $region52
        $region51: #{tpu_custom_call.1} parent=39 // pred_region
          %246 = dma.done [#allocation6], 4096
        $region52: #{tpu_custom_call.1} parent=39 // pred_fallthru
          _
        %s247 = sand.u32 %s31, 1
        %s248 = scalar_lea.sflag [#allocation3], %s247
        %s249 = sand.u32 %s31, 1
        %s250 = smul.addr %s249, 8
        %s251 = scalar_lea.vmem [#allocation2], %s250
        %p252 = pneg %p44
        %p253 = pneg %p41
        %p254 = pneg %p65
        %p255 = pneg %p62
        %p256 = pneg %p86
        %p257 = pneg %p83
        %p258 = pneg %p107
        %p259 = pneg %p104
        %p260 = pneg %p128
        %p261 = pneg %p125
        %p262 = pneg %p154
        %p263 = pneg %p151
        %s264 = sand.u32 %s141, 1
        %s265 = scalar_lea.sflag [#allocation4], %s264
        %s266 = sand.u32 %s141, 1
        %s267 = smul.addr %s266, 8
        %s268 = scalar_lea.vmem [#allocation8], %s267
        %v269 = vld [vmem:[%s234] sm:$0xff]
        %v270 = vld [vmem:[#allocation5] sm:$0xff]
        %v271 = vld [vmem:[#allocation5 + $0x8] sm:$0xff]
        %v272 = vld [vmem:[#allocation5 + $0x10] sm:$0xff]
        %v273 = vld [vmem:[#allocation5 + $0x18] sm:$0xff]
        %v274 = vld [vmem:[#allocation5 + $0x20] sm:$0xff]
        %v275 = vld [vmem:[#allocation5 + $0x28] sm:$0xff]
        %v276 = vld [vmem:[#allocation5 + $0x30] sm:$0xff]
        %v277 = vld [vmem:[#allocation5 + $0x38] sm:$0xff]
        %v278 = vld [vmem:[#allocation5 + $0x40] sm:$0xff]
        %v279 = vld [vmem:[#allocation5 + $0x48] sm:$0xff]
        %v280 = vld [vmem:[#allocation5 + $0x50] sm:$0xff]
        %v281 = vld [vmem:[#allocation5 + $0x58] sm:$0xff]
        %v282 = vld [vmem:[#allocation5 + $0x60] sm:$0xff]
        %v283 = vld [vmem:[#allocation5 + $0x68] sm:$0xff]
        %v284 = vld [vmem:[#allocation5 + $0x70] sm:$0xff]
        %v285 = vld [vmem:[#allocation5 + $0x78] sm:$0xff]
        %v286 = vld [vmem:[#allocation5 + $0x80] sm:$0xff]
        %v287 = vld [vmem:[#allocation5 + $0x88] sm:$0xff]
        %v288 = vld [vmem:[#allocation5 + $0x90] sm:$0xff]
        %v289 = vld [vmem:[#allocation5 + $0x98] sm:$0xff]
        %v290 = vld [vmem:[#allocation5 + $0xa0] sm:$0xff]
        %v291 = vld [vmem:[#allocation5 + $0xa8] sm:$0xff]
        %v292 = vld [vmem:[#allocation5 + $0xb0] sm:$0xff]
        %v293 = vld [vmem:[#allocation5 + $0xb8] sm:$0xff]
        %v294 = vld [vmem:[#allocation5 + $0xc0] sm:$0xff]
        %v295 = vld [vmem:[#allocation5 + $0xc8] sm:$0xff]
        %v296 = vld [vmem:[#allocation5 + $0xd0] sm:$0xff]
        %v297 = vld [vmem:[#allocation5 + $0xd8] sm:$0xff]
        %v298 = vld [vmem:[#allocation5 + $0xe0] sm:$0xff]
        %v299 = vld [vmem:[#allocation5 + $0xe8] sm:$0xff]
        %v300 = vld [vmem:[#allocation5 + $0xf0] sm:$0xff]
        %v301 = vld [vmem:[#allocation5 + $0xf8] sm:$0xff]
        %v302 = vld [vmem:[%s2] sm:$0x3]
        %v304 = vlaneseq
        %v305 = vshrl.u32 %v304, 7
        %v306 = vsub.s32 0, %v305
        %v307 = vrot.slane %v302, %v306
        %v308 = vlaneseq
        %v309 = vshrl.u32 %v308, 7
        %v310 = vsub.s32 1, %v309
        %v311 = vrot.slane %v302, %v310
        %314 = vmatprep.subr.mxu0 %v271
        %315 = vmatpush1.msra.mxu0 %v270
        %316 = vmatprep.subr.mxu0 %v273
        %317 = vmatpush1.msra.mxu0 %v272
        %318 = vmatprep.subr.mxu0 %v275
        %319 = vmatpush1.msra.mxu0 %v274
        %320 = vmatprep.subr.mxu0 %v277
        %321 = vmatpush1.msra.mxu0 %v276
        %322 = vmatprep.subr.mxu0 %v279
        %323 = vmatpush1.msra.mxu0 %v278
        %324 = vmatprep.subr.mxu0 %v281
        %325 = vmatpush1.msra.mxu0 %v280
        %326 = vmatprep.subr.mxu0 %v283
        %327 = vmatpush1.msra.mxu0 %v282
        %328 = vmatprep.subr.mxu0 %v285
        %329 = vmatpush1.msra.mxu0 %v284
        %330 = vmatprep.subr.mxu0 %v287
        %331 = vmatpush1.msra.mxu0 %v286
        %332 = vmatprep.subr.mxu0 %v289
        %333 = vmatpush1.msra.mxu0 %v288
        %334 = vmatprep.subr.mxu0 %v291
        %335 = vmatpush1.msra.mxu0 %v290
        %336 = vmatprep.subr.mxu0 %v293
        %337 = vmatpush1.msra.mxu0 %v292
        %338 = vmatprep.subr.mxu0 %v295
        %339 = vmatpush1.msra.mxu0 %v294
        %340 = vmatprep.subr.mxu0 %v297
        %341 = vmatpush1.msra.mxu0 %v296
        %342 = vmatprep.subr.mxu0 %v299
        %343 = vmatpush1.msra.mxu0 %v298
        %344 = vmatprep.subr.mxu0 %v301
        %345 = vmatpush1.msra.mxu0 %v300
        %346 = vmatprep.subr.mxu0 0.0
        %347 = vmatpush1.msra.mxu0 0.0
        %348 = vmatprep.subr.mxu0 0.0
        %349 = vmatpush1.msra.mxu0 0.0
        %350 = vmatprep.subr.mxu0 0.0
        %351 = vmatpush1.msra.mxu0 0.0
        %352 = vmatprep.subr.mxu0 0.0
        %353 = vmatpush1.msra.mxu0 0.0
        %354 = vmatprep.subr.mxu0 0.0
        %355 = vmatpush1.msra.mxu0 0.0
        %356 = vmatprep.subr.mxu0 0.0
        %357 = vmatpush1.msra.mxu0 0.0
        %358 = vmatprep.subr.mxu0 0.0
        %359 = vmatpush1.msra.mxu0 0.0
        %360 = vmatprep.subr.mxu0 0.0
        %361 = vmatpush1.msra.mxu0 0.0
        %362 = vmatprep.subr.mxu0 0.0
        %363 = vmatpush1.msra.mxu0 0.0
        %364 = vmatprep.subr.mxu0 0.0
        %365 = vmatpush1.msra.mxu0 0.0
        %366 = vmatprep.subr.mxu0 0.0
        %367 = vmatpush1.msra.mxu0 0.0
        %368 = vmatprep.subr.mxu0 0.0
        %369 = vmatpush1.msra.mxu0 0.0
        %370 = vmatprep.subr.mxu0 0.0
        %371 = vmatpush1.msra.mxu0 0.0
        %372 = vmatprep.subr.mxu0 0.0
        %373 = vmatpush1.msra.mxu0 0.0
        %374 = vmatprep.subr.mxu0 0.0
        %375 = vmatpush1.msra.mxu0 0.0
        %376 = vmatprep.subr.mxu0 0.0
        %377 = vmatpush1.msra.mxu0 0.0
        %378 = vmatprep.mubr.f32.mxu0 0.0
        %379 = vmatmul.mubr.f32.gmra.mrb[0].mxu0 %v269
        %v380 = vpop.f32.mrb[0].mxu0
        %v381 = vadd.f32 %v307, %v380
        %v382 = vpop.f32.mrb[0].mxu0
        %v383 = vadd.f32 %v311, %v382
        %384 = vdwg.mxu0
        %v385 = vmul.f32 %v381, 0.5
        %v386 = vmul.f32 %v383, 0.5
        %v387 = vmul.f32 %v381, 0.70710677
        %v388 = vmul.f32 %v383, 0.70710677
        %vm389 = vcmp.lt.f32.partialorder %v387, 0.0
        %vm390 = vcmp.lt.f32.partialorder %v388, 0.0
        %v391 = vsel %vm389, -1.0, 1.0
        %v392 = vsel %vm390, -1.0, 1.0
        %v393 = vand.u32 2147483647, %v387
        %v394 = vand.u32 2147483647, %v388
        %v395 = vmul.f32 %v393, 0.3275911
        %v396 = vmul.f32 %v394, 0.3275911
        %v397 = vadd.f32 %v395, 1.0
        %v398 = vadd.f32 %v396, 1.0
        %v399 = vrcp.pop %v397
        %v400 = vmul.f32 1.0, %v399
        %v401 = vrcp.pop %v398
        %v402 = vmul.f32 1.0, %v401
        %v403 = vmul.f32 %v400, 1.0614054
        %v404 = vmul.f32 %v402, 1.0614054
        %v405 = vadd.f32 %v403, -1.4531521
        %v406 = vadd.f32 %v404, -1.4531521
        %v407 = vmul.f32 %v400, %v405
        %v408 = vmul.f32 %v402, %v406
        %v409 = vadd.f32 %v407, 1.4214138
        %v410 = vadd.f32 %v408, 1.4214138
        %v411 = vmul.f32 %v400, %v409
        %v412 = vmul.f32 %v402, %v410
        %v413 = vadd.f32 %v411, -0.28449672
        %v414 = vadd.f32 %v412, -0.28449672
        %v415 = vmul.f32 %v400, %v413
        %v416 = vmul.f32 %v402, %v414
        %v417 = vadd.f32 %v415, 0.2548296
        %v418 = vadd.f32 %v416, 0.2548296
        %v419 = vmul.f32 %v400, %v417
        %v420 = vmul.f32 %v402, %v418
        %v421 = vsub.f32 0.0, %v393
        %v422 = vsub.f32 0.0, %v394
        %v423 = vmul.f32 %v421, %v393
        %v424 = vmul.f32 %v422, %v394
        %v425 = vmul.f32 %v423, 1.442695
        %v426 = vpow.pop %v425
        %v427 = vmul.f32 %v424, 1.442695
        %v428 = vpow.pop %v427
        %v429 = vmul.f32 %v419, %v426
        %v430 = vmul.f32 %v420, %v428
        %v431 = vsub.f32 1.0, %v429
        %v432 = vsub.f32 1.0, %v430
        %v433 = vmul.f32 %v391, %v431
        %v434 = vmul.f32 %v392, %v432
        %v435 = vadd.f32 %v433, 1.0
        %v436 = vadd.f32 %v434, 1.0
        %v437 = vmul.f32 %v385, %v435
        %v438 = vmul.f32 %v386, %v436
        %v439 = vld [vmem:[#allocation7] sm:$0xff]
        %v440 = vld [vmem:[#allocation7 + $0x8] sm:$0xff]
        %v441 = vld [vmem:[#allocation7 + $0x10] sm:$0xff]
        %v442 = vld [vmem:[#allocation7 + $0x18] sm:$0xff]
        %v443 = vld [vmem:[#allocation7 + $0x20] sm:$0xff]
        %v444 = vld [vmem:[#allocation7 + $0x28] sm:$0xff]
        %v445 = vld [vmem:[#allocation7 + $0x30] sm:$0xff]
        %v446 = vld [vmem:[#allocation7 + $0x38] sm:$0xff]
        %v447 = vld [vmem:[#allocation7 + $0x40] sm:$0xff]
        %v448 = vld [vmem:[#allocation7 + $0x48] sm:$0xff]
        %v449 = vld [vmem:[#allocation7 + $0x50] sm:$0xff]
        %v450 = vld [vmem:[#allocation7 + $0x58] sm:$0xff]
        %v451 = vld [vmem:[#allocation7 + $0x60] sm:$0xff]
        %v452 = vld [vmem:[#allocation7 + $0x68] sm:$0xff]
        %v453 = vld [vmem:[#allocation7 + $0x70] sm:$0xff]
        %v454 = vld [vmem:[#allocation7 + $0x78] sm:$0xff]
        %v455 = vld [vmem:[#allocation7 + $0x80] sm:$0xff]
        %v456 = vld [vmem:[#allocation7 + $0x88] sm:$0xff]
        %v457 = vld [vmem:[#allocation7 + $0x90] sm:$0xff]
        %v458 = vld [vmem:[#allocation7 + $0x98] sm:$0xff]
        %v459 = vld [vmem:[#allocation7 + $0xa0] sm:$0xff]
        %v460 = vld [vmem:[#allocation7 + $0xa8] sm:$0xff]
        %v461 = vld [vmem:[#allocation7 + $0xb0] sm:$0xff]
        %v462 = vld [vmem:[#allocation7 + $0xb8] sm:$0xff]
        %v463 = vld [vmem:[#allocation7 + $0xc0] sm:$0xff]
        %v464 = vld [vmem:[#allocation7 + $0xc8] sm:$0xff]
        %v465 = vld [vmem:[#allocation7 + $0xd0] sm:$0xff]
        %v466 = vld [vmem:[#allocation7 + $0xd8] sm:$0xff]
        %v467 = vld [vmem:[#allocation7 + $0xe0] sm:$0xff]
        %v468 = vld [vmem:[#allocation7 + $0xe8] sm:$0xff]
        %v469 = vld [vmem:[#allocation7 + $0xf0] sm:$0xff]
        %v470 = vld [vmem:[#allocation7 + $0xf8] sm:$0xff]
        %v471 = vld [vmem:[%s4] sm:$0x1]
        %v473 = vlaneseq
        %v474 = vshrl.u32 %v473, 7
        %v475 = vsub.s32 0, %v474
        %v476 = vrot.slane %v471, %v475
        %478 = vmatprep.subr.mxu0 0.0
        %479 = vmatpush1.msra.mxu0 %v439
        %480 = vmatprep.subr.mxu0 0.0
        %481 = vmatpush1.msra.mxu0 %v440
        %482 = vmatprep.subr.mxu0 0.0
        %483 = vmatpush1.msra.mxu0 %v441
        %484 = vmatprep.subr.mxu0 0.0
        %485 = vmatpush1.msra.mxu0 %v442
        %486 = vmatprep.subr.mxu0 0.0
        %487 = vmatpush1.msra.mxu0 %v443
        %488 = vmatprep.subr.mxu0 0.0
        %489 = vmatpush1.msra.mxu0 %v444
        %490 = vmatprep.subr.mxu0 0.0
        %491 = vmatpush1.msra.mxu0 %v445
        %492 = vmatprep.subr.mxu0 0.0
        %493 = vmatpush1.msra.mxu0 %v446
        %494 = vmatprep.subr.mxu0 0.0
        %495 = vmatpush1.msra.mxu0 %v447
        %496 = vmatprep.subr.mxu0 0.0
        %497 = vmatpush1.msra.mxu0 %v448
        %498 = vmatprep.subr.mxu0 0.0
        %499 = vmatpush1.msra.mxu0 %v449
        %500 = vmatprep.subr.mxu0 0.0
        %501 = vmatpush1.msra.mxu0 %v450
        %502 = vmatprep.subr.mxu0 0.0
        %503 = vmatpush1.msra.mxu0 %v451
        %504 = vmatprep.subr.mxu0 0.0
        %505 = vmatpush1.msra.mxu0 %v452
        %506 = vmatprep.subr.mxu0 0.0
        %507 = vmatpush1.msra.mxu0 %v453
        %508 = vmatprep.subr.mxu0 0.0
        %509 = vmatpush1.msra.mxu0 %v454
        %510 = vmatprep.subr.mxu0 0.0
        %511 = vmatpush1.msra.mxu0 %v455
        %512 = vmatprep.subr.mxu0 0.0
        %513 = vmatpush1.msra.mxu0 %v456
        %514 = vmatprep.subr.mxu0 0.0
        %515 = vmatpush1.msra.mxu0 %v457
        %516 = vmatprep.subr.mxu0 0.0
        %517 = vmatpush1.msra.mxu0 %v458
        %518 = vmatprep.subr.mxu0 0.0
        %519 = vmatpush1.msra.mxu0 %v459
        %520 = vmatprep.subr.mxu0 0.0
        %521 = vmatpush1.msra.mxu0 %v460
        %522 = vmatprep.subr.mxu0 0.0
        %523 = vmatpush1.msra.mxu0 %v461
        %524 = vmatprep.subr.mxu0 0.0
        %525 = vmatpush1.msra.mxu0 %v462
        %526 = vmatprep.subr.mxu0 0.0
        %527 = vmatpush1.msra.mxu0 %v463
        %528 = vmatprep.subr.mxu0 0.0
        %529 = vmatpush1.msra.mxu0 %v464
        %530 = vmatprep.subr.mxu0 0.0
        %531 = vmatpush1.msra.mxu0 %v465
        %532 = vmatprep.subr.mxu0 0.0
        %533 = vmatpush1.msra.mxu0 %v466
        %534 = vmatprep.subr.mxu0 0.0
        %535 = vmatpush1.msra.mxu0 %v467
        %536 = vmatprep.subr.mxu0 0.0
        %537 = vmatpush1.msra.mxu0 %v468
        %538 = vmatprep.subr.mxu0 0.0
        %539 = vmatpush1.msra.mxu0 %v469
        %540 = vmatprep.subr.mxu0 0.0
        %541 = vmatpush1.msra.mxu0 %v470
        %542 = vmatprep.mubr.f32.mxu0 %v438
        %543 = vmatmul.mubr.f32.gmra.mrb[0].mxu0 %v437
        %v544 = vpop.f32.mrb[0].mxu0
        %v545 = vadd.f32 %v476, %v544
        %v546 = vpop.f32.mrb[0].mxu0
        %547 = vdwg.mxu0
        %548 = vst [vmem:[%s268] sm:$0xff] %v545
        %s549 = sand.u32 %s141, 1
        %s550 = scalar_lea.sflag [#allocation4], %s549
        %s551 = sand.u32 %s141, 1
        %s552 = smul.addr %s551, 8
        %s553 = scalar_lea.vmem [#allocation8], %s552
        // Predicated region
        $region53: #{tpu_custom_call.1} parent=39 // pred_check
          %p554 = pneg %p151
        $region54: #{tpu_custom_call.1} parent=39 // pred_check_branch
          %556 = sbr.rel (%p554) target = $region56
        $region55: #{tpu_custom_call.1} parent=39 // pred_region
          %s558 = ssub.s32 128, 128
          %559 = vsyncadd %s550, %s558
          %s560 = smul.addr %s23, 128
          %s561 = scalar_lea.hbm %s5, %s560
          %s563 = sshll.u32 %s553, 4
          %s564 = int_to_ptr.vmem [resolvable:$true] %s563
          %566 = dma.vmem_to_hbm [thread:$0]  %s564, 128, %s561, %s550
        $region56: #{tpu_custom_call.1} parent=39 // pred_fallthru
          _
      $region40: #{tpu_custom_call.1} parent=5 // pred_fallthru
        _
      %p567 = scmp.le.s32.totalorder 2, %s18
      // Predicated region
      $region57: #{tpu_custom_call.1} parent=5 // pred_check
        %p568 = pneg %p567
      $region58: #{tpu_custom_call.1} parent=5 // pred_check_branch
        %570 = sbr.rel (%p568) target = $region60
      $region59: #{tpu_custom_call.1} parent=5 // pred_region
        %s571 = ssub.s32 %s18, 2
        // Predicated region
        $region61: #{tpu_custom_call.1} parent=59 // pred_check
          %p572 = pneg %p157
        $region62: #{tpu_custom_call.1} parent=59 // pred_check_branch
          %574 = sbr.rel (%p572) target = $region64
        $region63: #{tpu_custom_call.1} parent=59 // pred_region
          %s575 = sand.u32 %s142, 1
          %s576 = scalar_lea.sflag [#allocation4], %s575
          %s577 = sand.u32 %s142, 1
          %s578 = smul.addr %s577, 8
          %s579 = scalar_lea.vmem [#allocation8], %s578
          %580 = dma.done %s576, 128
        $region64: #{tpu_custom_call.1} parent=59 // pred_fallthru
          _
      $region60: #{tpu_custom_call.1} parent=5 // pred_fallthru
        _
    $region6: #{tpu_custom_call.1} parent=1 // loop_footer
      %s22 = sadd.s32 1, %s18
    $region7: #{tpu_custom_call.1} parent=1 // loop_footer_branch
      %17 = sbr.rel target = $region3
    $region8: #{tpu_custom_call.1} parent=1 // loop_exit
      _
    %581 = vsyncpa [#allocation3], 1
    %s582 = scalar_lea.sflag [#allocation3], 1
    %583 = vsyncpa %s582, 1
    %584 = vsyncpa [#allocation6], 1
    %585 = vsyncpa [#allocation4], 1
    %s586 = scalar_lea.sflag [#allocation4], 1
    %587 = vsyncpa %s586, 1

</llo_original>
